<compile_context>
chip_gen: v7x
topology: tpu7x:2x2x1
jax: 0.10.0
libtpu: 0.0.40
codegen_flags: <defaults>
</compile_context>

<pallas_src>
import functools

import jax
import jax.numpy as jnp
import numpy as np
from jax.experimental import pallas as pl
from jax.experimental.pallas import tpu as pltpu

BN_EPS = 1e-5
_TARGET_STREAM_BYTES_PER_STEP = 2 * 1024 * 1024   # per-step streamed-bytes target
_STATIC_UNROLL_MAX = 8                            # unroll threshold (not a cap)


def _vmem_limit_bytes():
    """Generation-aware VMEM limit: ~3/4 of physical, capped at 100 MiB."""
    cap = 64 * 1024 * 1024                        # conservative fallback (v7x)
    try:
        info = pltpu.get_tpu_info()
        cap = int(getattr(info, "vmem_capacity_bytes", cap)) or cap
    except Exception:
        pass
    return max(32 * 1024 * 1024, min(cap * 3 // 4, 100 * 1024 * 1024))


def _images_per_block(n, c, hw, iw, halo, vmem_limit_bytes):
    """Images per grid block from the full double-buffered per-step footprint."""
    stream_bytes_per_img = 3 * c * hw * 4         # worst phase: conv + x + out
    fixed_bytes = 4 * (9 * c * c + 2 * hw         # resident weights + edge masks
                       + c * (hw + 2 * halo)      # zero-haloed image scratch
                       + 9 * c * hw               # stacked-tap operand scratch
                       + 2 * c * hw)              # deferred BN accumulators
    budget = max(stream_bytes_per_img,
                 min(_TARGET_STREAM_BYTES_PER_STEP,
                     (vmem_limit_bytes // 2 - fixed_bytes) // 2))
    tn = max(1, min(n, budget // stream_bytes_per_img))
    if n >= 2:
        tn = min(tn, n // 2)      # keep >= 2 grid steps (pipeline + 2nd v7x core)
    while n % tn:
        tn -= 1
    return tn


def _conv_stats_kernel(x_ref, w_ref, mask_ref, conv_ref, stats_ref,
                       xw_ref, stack_ref, s1_ref, s2_ref,
                       *, tn, c, iw, hw, halo):
    """3x3 'same' conv as ONE (C, 9C) @ (9C, HW) matmul per image + BN sums."""
    # Zero the halo buffer and deferred BN accumulators once per grid step.
    xw_ref[...] = jnp.zeros_like(xw_ref)
    s1_ref[...] = jnp.zeros_like(s1_ref)
    s2_ref[...] = jnp.zeros_like(s2_ref)

    def one_image(t):
        # 128-lane-aligned copy of image t into the zero-haloed buffer.
        xw_ref[:, halo:halo + hw] = x_ref[t]
        # Materialize the 9 lane-shifted tap views ONCE into the stacked operand.
        for k in range(9):
            dy, dx = divmod(k, 3)
            start = halo + (dy - 1) * iw + (dx - 1)        # static lane offset
            piece = xw_ref[:, start:start + hw]
            if dx != 1:                                    # mask horizontal wrap
                piece = piece * mask_ref[dx // 2:dx // 2 + 1, :]
            stack_ref[k * c:(k + 1) * c, :] = piece
        # One MXU matmul per image (K = 9*C) instead of 9 tiny per-tap matmuls.
        acc = jnp.dot(w_ref[...], stack_ref[...],
                      preferred_element_type=jnp.float32)
        conv_ref[t] = acc                                  # lane-dense store
        s1_ref[...] += acc                                 # deferred BN sums:
        s2_ref[...] += acc * acc                           # full-width VPU adds

    if tn <= _STATIC_UNROLL_MAX:
        for t in range(tn):                                # short static unroll
            one_image(t)
    else:
        pl.loop(0, tn)(one_image)                          # no unbounded unroll

    # Single cross-lane (XLU) reduction per grid block; merged (C, 2) output.
    sum1 = jnp.sum(s1_ref[...], axis=1, keepdims=True)     # (C, 1)
    sum2 = jnp.sum(s2_ref[...], axis=1, keepdims=True)     # (C, 1)
    stats_ref[0] = jnp.concatenate([sum1, sum2], axis=1)   # (C, 2)


def _bn_relu_res_kernel(conv_ref, x_ref, scale_ref, shift_ref, out_ref):
    """out = relu(conv*scale + shift) + x, whole block, lane-compact layout."""
    y = conv_ref[...] * scale_ref[...] + shift_ref[...]    # (C, 1) broadcasts
    out_ref[...] = (jnp.maximum(y, 0.0) + x_ref[...]).astype(out_ref.dtype)


def resblock_forward(x_nchw, weight_oihw, gamma, beta):
    """Pallas ResBlock forward. x_nchw: (N, C, H, W) f32 -> (N, C, H, W) f32."""
    n, c, h, w = x_nchw.shape
    hw = h * w
    halo = -(-(w + 1) // 128) * 128          # >= W+1 and 128-aligned middle write

    # Compact NCHW-flattened layout end to end (free contiguous reshapes only).
    x32 = x_nchw.astype(jnp.float32).reshape(n, c, hw)

    # OIHW -> (C_out, 9*C_in): LHS of the single stacked-tap matmul.
    w_flat = jnp.transpose(weight_oihw.astype(jnp.float32),
                           (0, 2, 3, 1)).reshape(c, 9 * c)

    # Horizontal-wrap masks for taps with dx=0 / dx=2 (vertical out-of-range is
    # handled by the zero halo built inside the kernel).
    col = jnp.arange(hw, dtype=jnp.int32) % w
    edge_mask = jnp.stack([col != 0, col != w - 1]).astype(jnp.float32)  # (2, HW)

    vmem_limit = _vmem_limit_bytes()
    tn = _images_per_block(n, c, hw, w, halo, vmem_limit)
    g = n // tn
    cparams = pltpu.CompilerParams(dimension_semantics=("parallel",),
                                   vmem_limit_bytes=vmem_limit)

    # ---- Phase 1: conv + per-block partial BN statistics --------------------
    conv, stats = pl.pallas_call(
        functools.partial(_conv_stats_kernel, tn=tn, c=c, iw=w, hw=hw, halo=halo),
        grid=(g,),
        in_specs=[
            pl.BlockSpec((tn, c, hw), lambda i: (i, 0, 0)),   # input images
            pl.BlockSpec((c, 9 * c), lambda i: (0, 0)),       # resident weights
            pl.BlockSpec((2, hw), lambda i: (0, 0)),          # resident edge masks
        ],
        out_specs=(
            pl.BlockSpec((tn, c, hw), lambda i: (i, 0, 0)),   # conv (lane-dense)
            pl.BlockSpec((1, c, 2), lambda i: (i, 0, 0)),     # merged sum/sumsq
        ),
        out_shape=(
            jax.ShapeDtypeStruct((n, c, hw), jnp.float32),
            jax.ShapeDtypeStruct((g, c, 2), jnp.float32),
        ),
        scratch_shapes=[
            pltpu.VMEM((c, hw + 2 * halo), jnp.float32),      # zero-haloed image
            pltpu.VMEM((9 * c, hw), jnp.float32),             # stacked tap operand
            pltpu.VMEM((c, hw), jnp.float32),                 # deferred sum
            pltpu.VMEM((c, hw), jnp.float32),                 # deferred sum-of-sq
        ],
        compiler_params=cparams,
    )(x32, w_flat, edge_mask)

    # ---- Tiny cross-block reduction -> BatchNorm2d batch stats --------------
    # (training mode: per-channel mean over N*H*W, biased variance, eps=1e-5)
    # NOTE: one-pass E[x^2]-E[x]^2 in f32; fine for O(1) activations at the
    # tested tolerance (switch to a two-pass form if tolerances tighten).
    count = jnp.float32(n * hw)
    s1 = jnp.sum(stats[:, :, 0], axis=0)
    s2 = jnp.sum(stats[:, :, 1], axis=0)
    mean = s1 / count
    var = s2 / count - mean * mean
    inv = jax.lax.rsqrt(var + BN_EPS)
    g32 = gamma.astype(jnp.float32)
    scale = (g32 * inv).reshape(c, 1)
    shift = (beta.astype(jnp.float32) - mean * g32 * inv).reshape(c, 1)

    # ---- Phase 2: normalize + ReLU + residual (conv buffer aliased to out) ---
    out_flat = pl.pallas_call(
        _bn_relu_res_kernel,
        grid=(g,),
        in_specs=[
            pl.BlockSpec((tn, c, hw), lambda i: (i, 0, 0)),   # conv (aliased)
            pl.BlockSpec((tn, c, hw), lambda i: (i, 0, 0)),   # residual = x
            pl.BlockSpec((c, 1), lambda i: (0, 0)),           # resident BN scale
            pl.BlockSpec((c, 1), lambda i: (0, 0)),           # resident BN shift
        ],
        out_specs=pl.BlockSpec((tn, c, hw), lambda i: (i, 0, 0)),
        out_shape=jax.ShapeDtypeStruct((n, c, hw), jnp.float32),
        input_output_aliases={0: 0},                          # reuse conv's HBM
        compiler_params=cparams,
    )(conv, x32, scale, shift)

    return out_flat.reshape(n, c, h, w)


def resblock_reference(x_nchw, weight_oihw, gamma, beta):
    """Pure-JAX reference matching the PyTorch module (training-mode BN)."""
    conv = jax.lax.conv_general_dilated(
        x_nchw, weight_oihw, window_strides=(1, 1), padding="SAME",
        dimension_numbers=("NCHW", "OIHW", "NCHW"))
    mean = conv.mean(axis=(0, 2, 3), keepdims=True)
    var = ((conv - mean) ** 2).mean(axis=(0, 2, 3), keepdims=True)
    y = (conv - mean) * jax.lax.rsqrt(var + BN_EPS)
    y = y * gamma.reshape(1, -1, 1, 1) + beta.reshape(1, -1, 1, 1)
    return jnp.maximum(y, 0.0) + x_nchw


if __name__ == "__main__":
    key = jax.random.PRNGKey(0)
    N, C, H, W = 2, 4, 16, 16

    k_x, k_w = jax.random.split(key)
    x = jax.random.normal(k_x, (N, C, H, W), dtype=jnp.float32)

    # kaiming_normal_(nonlinearity='relu'): std = sqrt(2 / fan_in), fan_in = C*3*3
    fan_in = C * 3 * 3
    weight = jax.random.normal(k_w, (C, C, 3, 3), dtype=jnp.float32) * jnp.sqrt(2.0 / fan_in)

    gamma = jnp.full((C,), 0.5, dtype=jnp.float32)   # batch_norm.weight = 0.5
    beta = jnp.zeros((C,), dtype=jnp.float32)        # batch_norm.bias   = 0.0

    out = jax.block_until_ready(resblock_forward(x, weight, gamma, beta))

    ref = resblock_reference(x, weight, gamma, beta)
    np.testing.assert_allclose(np.asarray(out), np.asarray(ref), rtol=2e-4, atol=2e-4)

    print("KERNEL_OK")
</pallas_src>

<mosaic_0001>
module attributes {stable_mosaic.version = 11 : i64} {
  func.func @_conv_stats_kernel(%arg0: i32, %arg1: memref<1x4x256xf32, #tpu.memory_space<vmem>>, %arg2: memref<4x36xf32, #tpu.memory_space<vmem>>, %arg3: memref<2x256xf32, #tpu.memory_space<vmem>>, %arg4: memref<1x4x256xf32, #tpu.memory_space<vmem>>, %arg5: memref<1x4x2xf32, #tpu.memory_space<vmem>>, %arg6: memref<4x512xf32, #tpu.memory_space<vmem>>, %arg7: memref<36x256xf32, #tpu.memory_space<vmem>>, %arg8: memref<4x256xf32, #tpu.memory_space<vmem>>, %arg9: memref<4x256xf32, #tpu.memory_space<vmem>>) attributes {dimension_semantics = [#tpu.dimension_semantics<parallel>], iteration_bounds = array<i64: 2>, scalar_prefetch = 0 : i64, scratch_operands = 4 : i64, tpu.core_type = #tpu.core_type<tc>, window_params = [{transform_indices = @transform_0, window_bounds = array<i64: 1, 4, 256>}, {pipeline_mode = #tpu.pipeline_mode<synchronous>, transform_indices = @transform_1, window_bounds = array<i64: 4, 36>}, {pipeline_mode = #tpu.pipeline_mode<synchronous>, transform_indices = @transform_2, window_bounds = array<i64: 2, 256>}, {transform_indices = @transform_3, window_bounds = array<i64: 1, 4, 256>}, {transform_indices = @transform_4, window_bounds = array<i64: 1, 4, 2>}]} {
    %cst = arith.constant 0.000000e+00 : f32
    %0 = vector.broadcast %cst : f32 to vector<4x512xf32>
    %c0 = arith.constant 0 : index
    %c0_0 = arith.constant 0 : index
    %1 = vector.load %arg6[%c0, %c0_0] : memref<4x512xf32, #tpu.memory_space<vmem>>, vector<4x512xf32>
    tpu.vector_store %arg6[%c0, %c0_0], %0 {strides = array<i32>} : memref<4x512xf32, #tpu.memory_space<vmem>>, vector<4x512xf32>,
    %cst_1 = arith.constant 0.000000e+00 : f32
    %2 = vector.broadcast %cst_1 : f32 to vector<4x256xf32>
    %c0_2 = arith.constant 0 : index
    %c0_3 = arith.constant 0 : index
    %3 = vector.load %arg8[%c0_2, %c0_3] : memref<4x256xf32, #tpu.memory_space<vmem>>, vector<4x256xf32>
    tpu.vector_store %arg8[%c0_2, %c0_3], %2 {strides = array<i32>} : memref<4x256xf32, #tpu.memory_space<vmem>>, vector<4x256xf32>,
    %cst_4 = arith.constant 0.000000e+00 : f32
    %4 = vector.broadcast %cst_4 : f32 to vector<4x256xf32>
    %c0_5 = arith.constant 0 : index
    %c0_6 = arith.constant 0 : index
    %5 = vector.load %arg9[%c0_5, %c0_6] : memref<4x256xf32, #tpu.memory_space<vmem>>, vector<4x256xf32>
    tpu.vector_store %arg9[%c0_5, %c0_6], %4 {strides = array<i32>} : memref<4x256xf32, #tpu.memory_space<vmem>>, vector<4x256xf32>,
    %c0_7 = arith.constant 0 : index
    %c0_8 = arith.constant 0 : index
    %c0_9 = arith.constant 0 : index
    %6 = vector.load %arg1[%c0_7, %c0_8, %c0_9] : memref<1x4x256xf32, #tpu.memory_space<vmem>>, vector<1x4x256xf32>
    %7 = vector.shape_cast %6 : vector<1x4x256xf32> to vector<4x256xf32>
    %c0_10 = arith.constant 0 : index
    %c128 = arith.constant 128 : index
    %8 = vector.load %arg6[%c0_10, %c128] : memref<4x512xf32, #tpu.memory_space<vmem>>, vector<4x256xf32>
    tpu.vector_store %arg6[%c0_10, %c128], %7 {strides = array<i32>} : memref<4x512xf32, #tpu.memory_space<vmem>>, vector<4x256xf32>,
    %c0_11 = arith.constant 0 : index
    %c111 = arith.constant 111 : index
    %9 = vector.load %arg6[%c0_11, %c111] : memref<4x512xf32, #tpu.memory_space<vmem>>, vector<4x256xf32>
    %c0_12 = arith.constant 0 : index
    %c0_13 = arith.constant 0 : index
    %10 = vector.load %arg3[%c0_12, %c0_13] : memref<2x256xf32, #tpu.memory_space<vmem>>, vector<1x256xf32>
    %11 = vector.broadcast %10 : vector<1x256xf32> to vector<4x256xf32>
    %12 = arith.mulf %9, %11 : vector<4x256xf32>
    %c0_14 = arith.constant 0 : index
    %c0_15 = arith.constant 0 : index
    %13 = vector.load %arg7[%c0_14, %c0_15] : memref<36x256xf32, #tpu.memory_space<vmem>>, vector<4x256xf32>
    tpu.vector_store %arg7[%c0_14, %c0_15], %12 {strides = array<i32>} : memref<36x256xf32, #tpu.memory_space<vmem>>, vector<4x256xf32>,
    %c0_16 = arith.constant 0 : index
    %c112 = arith.constant 112 : index
    %14 = vector.load %arg6[%c0_16, %c112] : memref<4x512xf32, #tpu.memory_space<vmem>>, vector<4x256xf32>
    %c4 = arith.constant 4 : index
    %c0_17 = arith.constant 0 : index
    %15 = vector.load %arg7[%c4, %c0_17] : memref<36x256xf32, #tpu.memory_space<vmem>>, vector<4x256xf32>
    tpu.vector_store %arg7[%c4, %c0_17], %14 {strides = array<i32>} : memref<36x256xf32, #tpu.memory_space<vmem>>, vector<4x256xf32>,
    %c0_18 = arith.constant 0 : index
    %c113 = arith.constant 113 : index
    %16 = vector.load %arg6[%c0_18, %c113] : memref<4x512xf32, #tpu.memory_space<vmem>>, vector<4x256xf32>
    %c1 = arith.constant 1 : index
    %c0_19 = arith.constant 0 : index
    %17 = vector.load %arg3[%c1, %c0_19] : memref<2x256xf32, #tpu.memory_space<vmem>>, vector<1x256xf32>
    %18 = vector.broadcast %17 : vector<1x256xf32> to vector<4x256xf32>
    %19 = arith.mulf %16, %18 : vector<4x256xf32>
    %c8 = arith.constant 8 : index
    %c0_20 = arith.constant 0 : index
    %20 = vector.load %arg7[%c8, %c0_20] : memref<36x256xf32, #tpu.memory_space<vmem>>, vector<4x256xf32>
    tpu.vector_store %arg7[%c8, %c0_20], %19 {strides = array<i32>} : memref<36x256xf32, #tpu.memory_space<vmem>>, vector<4x256xf32>,
    %c0_21 = arith.constant 0 : index
    %c127 = arith.constant 127 : index
    %21 = vector.load %arg6[%c0_21, %c127] : memref<4x512xf32, #tpu.memory_space<vmem>>, vector<4x256xf32>
    %c0_22 = arith.constant 0 : index
    %c0_23 = arith.constant 0 : index
    %22 = vector.load %arg3[%c0_22, %c0_23] : memref<2x256xf32, #tpu.memory_space<vmem>>, vector<1x256xf32>
    %23 = vector.broadcast %22 : vector<1x256xf32> to vector<4x256xf32>
    %24 = arith.mulf %21, %23 : vector<4x256xf32>
    %c12 = arith.constant 12 : index
    %c0_24 = arith.constant 0 : index
    %25 = vector.load %arg7[%c12, %c0_24] : memref<36x256xf32, #tpu.memory_space<vmem>>, vector<4x256xf32>
    tpu.vector_store %arg7[%c12, %c0_24], %24 {strides = array<i32>} : memref<36x256xf32, #tpu.memory_space<vmem>>, vector<4x256xf32>,
    %c0_25 = arith.constant 0 : index
    %c128_26 = arith.constant 128 : index
    %26 = vector.load %arg6[%c0_25, %c128_26] : memref<4x512xf32, #tpu.memory_space<vmem>>, vector<4x256xf32>
    %c16 = arith.constant 16 : index
    %c0_27 = arith.constant 0 : index
    %27 = vector.load %arg7[%c16, %c0_27] : memref<36x256xf32, #tpu.memory_space<vmem>>, vector<4x256xf32>
    tpu.vector_store %arg7[%c16, %c0_27], %26 {strides = array<i32>} : memref<36x256xf32, #tpu.memory_space<vmem>>, vector<4x256xf32>,
    %c0_28 = arith.constant 0 : index
    %c129 = arith.constant 129 : index
    %28 = vector.load %arg6[%c0_28, %c129] : memref<4x512xf32, #tpu.memory_space<vmem>>, vector<4x256xf32>
    %c1_29 = arith.constant 1 : index
    %c0_30 = arith.constant 0 : index
    %29 = vector.load %arg3[%c1_29, %c0_30] : memref<2x256xf32, #tpu.memory_space<vmem>>, vector<1x256xf32>
    %30 = vector.broadcast %29 : vector<1x256xf32> to vector<4x256xf32>
    %31 = arith.mulf %28, %30 : vector<4x256xf32>
    %c20 = arith.constant 20 : index
    %c0_31 = arith.constant 0 : index
    %32 = vector.load %arg7[%c20, %c0_31] : memref<36x256xf32, #tpu.memory_space<vmem>>, vector<4x256xf32>
    tpu.vector_store %arg7[%c20, %c0_31], %31 {strides = array<i32>} : memref<36x256xf32, #tpu.memory_space<vmem>>, vector<4x256xf32>,
    %c0_32 = arith.constant 0 : index
    %c143 = arith.constant 143 : index
    %33 = vector.load %arg6[%c0_32, %c143] : memref<4x512xf32, #tpu.memory_space<vmem>>, vector<4x256xf32>
    %c0_33 = arith.constant 0 : index
    %c0_34 = arith.constant 0 : index
    %34 = vector.load %arg3[%c0_33, %c0_34] : memref<2x256xf32, #tpu.memory_space<vmem>>, vector<1x256xf32>
    %35 = vector.broadcast %34 : vector<1x256xf32> to vector<4x256xf32>
    %36 = arith.mulf %33, %35 : vector<4x256xf32>
    %c24 = arith.constant 24 : index
    %c0_35 = arith.constant 0 : index
    %37 = vector.load %arg7[%c24, %c0_35] : memref<36x256xf32, #tpu.memory_space<vmem>>, vector<4x256xf32>
    tpu.vector_store %arg7[%c24, %c0_35], %36 {strides = array<i32>} : memref<36x256xf32, #tpu.memory_space<vmem>>, vector<4x256xf32>,
    %c0_36 = arith.constant 0 : index
    %c144 = arith.constant 144 : index
    %38 = vector.load %arg6[%c0_36, %c144] : memref<4x512xf32, #tpu.memory_space<vmem>>, vector<4x256xf32>
    %c28 = arith.constant 28 : index
    %c0_37 = arith.constant 0 : index
    %39 = vector.load %arg7[%c28, %c0_37] : memref<36x256xf32, #tpu.memory_space<vmem>>, vector<4x256xf32>
    tpu.vector_store %arg7[%c28, %c0_37], %38 {strides = array<i32>} : memref<36x256xf32, #tpu.memory_space<vmem>>, vector<4x256xf32>,
    %c0_38 = arith.constant 0 : index
    %c145 = arith.constant 145 : index
    %40 = vector.load %arg6[%c0_38, %c145] : memref<4x512xf32, #tpu.memory_space<vmem>>, vector<4x256xf32>
    %c1_39 = arith.constant 1 : index
    %c0_40 = arith.constant 0 : index
    %41 = vector.load %arg3[%c1_39, %c0_40] : memref<2x256xf32, #tpu.memory_space<vmem>>, vector<1x256xf32>
    %42 = vector.broadcast %41 : vector<1x256xf32> to vector<4x256xf32>
    %43 = arith.mulf %40, %42 : vector<4x256xf32>
    %c32 = arith.constant 32 : index
    %c0_41 = arith.constant 0 : index
    %44 = vector.load %arg7[%c32, %c0_41] : memref<36x256xf32, #tpu.memory_space<vmem>>, vector<4x256xf32>
    tpu.vector_store %arg7[%c32, %c0_41], %43 {strides = array<i32>} : memref<36x256xf32, #tpu.memory_space<vmem>>, vector<4x256xf32>,
    %c0_42 = arith.constant 0 : index
    %c0_43 = arith.constant 0 : index
    %45 = vector.load %arg2[%c0_42, %c0_43] : memref<4x36xf32, #tpu.memory_space<vmem>>, vector<4x36xf32>
    %c0_44 = arith.constant 0 : index
    %c0_45 = arith.constant 0 : index
    %46 = vector.load %arg7[%c0_44, %c0_45] : memref<36x256xf32, #tpu.memory_space<vmem>>, vector<36x256xf32>
    %cst_46 = arith.constant dense<0.000000e+00> : vector<4x256xf32>
    %47 = tpu.matmul %45, %46, %cst_46 {dimension_numbers = #tpu.dot_dimension_numbers<[1], [0], [0], [1], [0, 0, 1, 1], [], []>} : vector<4x36xf32>, vector<36x256xf32>, vector<4x256xf32> -> vector<4x256xf32>
    %c0_47 = arith.constant 0 : index
    %c0_48 = arith.constant 0 : index
    %c0_49 = arith.constant 0 : index
    %48 = vector.load %arg4[%c0_47, %c0_48, %c0_49] : memref<1x4x256xf32, #tpu.memory_space<vmem>>, vector<1x4x256xf32>
    %49 = vector.shape_cast %48 : vector<1x4x256xf32> to vector<4x256xf32>
    %50 = vector.shape_cast %47 : vector<4x256xf32> to vector<1x4x256xf32>
    tpu.vector_store %arg4[%c0_47, %c0_48, %c0_49], %50 {strides = array<i32>} : memref<1x4x256xf32, #tpu.memory_space<vmem>>, vector<1x4x256xf32>,
    %c0_50 = arith.constant 0 : index
    %c0_51 = arith.constant 0 : index
    %51 = vector.load %arg8[%c0_50, %c0_51] : memref<4x256xf32, #tpu.memory_space<vmem>>, vector<4x256xf32>
    %52 = arith.addf %51, %47 : vector<4x256xf32>
    %c0_52 = arith.constant 0 : index
    %c0_53 = arith.constant 0 : index
    %53 = vector.load %arg8[%c0_52, %c0_53] : memref<4x256xf32, #tpu.memory_space<vmem>>, vector<4x256xf32>
    tpu.vector_store %arg8[%c0_52, %c0_53], %52 {strides = array<i32>} : memref<4x256xf32, #tpu.memory_space<vmem>>, vector<4x256xf32>,
    %c0_54 = arith.constant 0 : index
    %c0_55 = arith.constant 0 : index
    %54 = vector.load %arg9[%c0_54, %c0_55] : memref<4x256xf32, #tpu.memory_space<vmem>>, vector<4x256xf32>
    %55 = arith.mulf %47, %47 : vector<4x256xf32>
    %56 = arith.addf %54, %55 : vector<4x256xf32>
    %c0_56 = arith.constant 0 : index
    %c0_57 = arith.constant 0 : index
    %57 = vector.load %arg9[%c0_56, %c0_57] : memref<4x256xf32, #tpu.memory_space<vmem>>, vector<4x256xf32>
    tpu.vector_store %arg9[%c0_56, %c0_57], %56 {strides = array<i32>} : memref<4x256xf32, #tpu.memory_space<vmem>>, vector<4x256xf32>,
    %c0_58 = arith.constant 0 : index
    %c0_59 = arith.constant 0 : index
    %58 = vector.load %arg8[%c0_58, %c0_59] : memref<4x256xf32, #tpu.memory_space<vmem>>, vector<4x256xf32>
    %cst_60 = arith.constant dense<0.000000e+00> : vector<4xf32>
    %59 = vector.multi_reduction <add>, %58, %cst_60 [1] : vector<4x256xf32> to vector<4xf32>
    %60 = vector.shape_cast %59 : vector<4xf32> to vector<4x1xf32>
    %c0_61 = arith.constant 0 : index
    %c0_62 = arith.constant 0 : index
    %61 = vector.load %arg9[%c0_61, %c0_62] : memref<4x256xf32, #tpu.memory_space<vmem>>, vector<4x256xf32>
    %cst_63 = arith.constant dense<0.000000e+00> : vector<4xf32>
    %62 = vector.multi_reduction <add>, %61, %cst_63 [1] : vector<4x256xf32> to vector<4xf32>
    %63 = vector.shape_cast %62 : vector<4xf32> to vector<4x1xf32>
    %64 = tpu.concatenate %60, %63 in 1 : vector<4x1xf32>, vector<4x1xf32> -> vector<4x2xf32>
    %c0_64 = arith.constant 0 : index
    %c0_65 = arith.constant 0 : index
    %c0_66 = arith.constant 0 : index
    %65 = vector.load %arg5[%c0_64, %c0_65, %c0_66] : memref<1x4x2xf32, #tpu.memory_space<vmem>>, vector<1x4x2xf32>
    %66 = vector.shape_cast %65 : vector<1x4x2xf32> to vector<4x2xf32>
    %67 = vector.shape_cast %64 : vector<4x2xf32> to vector<1x4x2xf32>
    tpu.vector_store %arg5[%c0_64, %c0_65, %c0_66], %67 {strides = array<i32>} : memref<1x4x2xf32, #tpu.memory_space<vmem>>, vector<1x4x2xf32>,
    return
  }
  func.func @transform_0(%arg0: i32) -> (i32, i32, i32) {
    %c0_i32 = arith.constant 0 : i32
    %c0_i32_0 = arith.constant 0 : i32
    %c0_i32_1 = arith.constant 0 : i32
    return %arg0, %c0_i32, %c0_i32_0 : i32, i32, i32
  }
  func.func @transform_1(%arg0: i32) -> (i32, i32) {
    %c0_i32 = arith.constant 0 : i32
    %c0_i32_0 = arith.constant 0 : i32
    %c0_i32_1 = arith.constant 0 : i32
    return %c0_i32, %c0_i32_0 : i32, i32
  }
  func.func @transform_2(%arg0: i32) -> (i32, i32) {
    %c0_i32 = arith.constant 0 : i32
    %c0_i32_0 = arith.constant 0 : i32
    %c0_i32_1 = arith.constant 0 : i32
    return %c0_i32, %c0_i32_0 : i32, i32
  }
  func.func @transform_3(%arg0: i32) -> (i32, i32, i32) {
    %c0_i32 = arith.constant 0 : i32
    %c0_i32_0 = arith.constant 0 : i32
    %c0_i32_1 = arith.constant 0 : i32
    return %arg0, %c0_i32, %c0_i32_0 : i32, i32, i32
  }
  func.func @transform_4(%arg0: i32) -> (i32, i32, i32) {
    %c0_i32 = arith.constant 0 : i32
    %c0_i32_0 = arith.constant 0 : i32
    %c0_i32_1 = arith.constant 0 : i32
    return %arg0, %c0_i32, %c0_i32_0 : i32, i32, i32
  }
}

</mosaic_0001>

<llo_original>
// kernel: tpu_custom_call.1
$region0: #{tpu_custom_call.1}
  #allocation0 [shape = 'u32[]', space=smem, size = 0x4, offset = 0x4, fixed_abs, tag = 'smem constant byte address 0x4 - core index']
  #allocation1 [shape = 'u32[144,128]{1,0:T(1,128)}', space=vmem, size = 0x12000, scoped, tag = 'internal scratch']
  #allocation2 [shape = 'f32[4,512]{1,0:T(4,128)}', space=vmem, size = 0x2000, scoped, tag = 'scratch operand']
  #allocation3 [shape = 'f32[36,256]{1,0:T(8,128)}', space=vmem, size = 0xa000, scoped, tag = 'scratch operand']
  #allocation4 [shape = 'f32[4,256]{1,0:T(4,128)}', space=vmem, size = 0x1000, scoped, tag = 'scratch operand']
  #allocation5 [shape = 'f32[4,256]{1,0:T(4,128)}', space=vmem, size = 0x1000, scoped, tag = 'scratch operand']
  %s0 = inlined_call_operand.hbm [shape: f32[2,4,256], index: 0, kind: input, shape index: {}]
  %s1 = inlined_call_operand.hbm [shape: f32[4,36], index: 1, kind: input, shape index: {}]
  %s2 = inlined_call_operand.vmem [shape: f32[2,256], index: 2, kind: input, shape index: {}]
  %s3 = inlined_call_operand.hbm [shape: f32[2,4,256], index: 3, kind: output, shape index: {0}]
  %s4 = inlined_call_operand.vmem [shape: f32[2,4,2], index: 4, kind: output, shape index: {1}]
  %5 = xla_tuple %s3, %s4
  %s6 = sld [smem:[#allocation0]]
  $region61: #{tpu_custom_call.1} parent=0
    _
  %s8 = ssub.s32 1, %s6
  %s9 = scalar_select 0, %s8, %s6
  $region1: #{tpu_custom_call.1} parent=0
    #allocation6 [shape = 'u8[8192]{0}', space=vmem, size = 0x2000, scoped, tag = 'input window, operand 0']
    #allocation7 [shape = 's32[2]{0}', space=sflag, size = 0x8, scoped, tag = 'scoped memory for tpu_custom_call.1']
    #allocation8 [shape = 's32[2]{0}', space=sflag, size = 0x8, scoped, tag = 'scoped memory for tpu_custom_call.1']
    #allocation9 [shape = 'u8[2048]{0}', space=vmem, size = 0x800, scoped, tag = 'input window, operand 1, single buffered']
    #allocation10 [shape = 's32[1]{0}', space=sflag, size = 0x4, scoped, tag = 'scoped memory for tpu_custom_call.1']
    #allocation11 [shape = 'u8[8192]{0}', space=vmem, size = 0x2000, scoped, tag = 'output window, operand 0']
    %10 = vsyncpa [#allocation7], 0
    %s11 = scalar_lea.sflag [#allocation7], 1
    %12 = vsyncpa %s11, 0
    %13 = vsyncpa [#allocation10], 0
    %14 = vsyncpa [#allocation8], 0
    %s15 = scalar_lea.sflag [#allocation8], 1
    %16 = vsyncpa %s15, 0
    loop: start=0, step=1, limit=4
    $region2: #{tpu_custom_call.1} parent=1 // loop_pre_header
      _
    $region3: #{tpu_custom_call.1} parent=1 // loop_header
      %s18 = sphi 0, %s22
      %p19 = scmp.ge.s32.totalorder %s18, 4
      %s28 = sphi 0, %s30
      %s31 = sphi 0, %s28
      %s32 = sphi 0, %s31
      %s48 = sphi 0, %s32
      %s52 = sphi 0, %s52
      %s54 = sphi 0, %s52
      %s55 = sphi 0, %s54
      %s69 = sphi 0, %s55
      %s73 = sphi 0, %s73
      %s75 = sphi 0, %s73
      %s76 = sphi 0, %s75
      %s90 = sphi 0, %s76
      %s96 = sphi 0, %s98
      %s99 = sphi 0, %s96
      %s100 = sphi 0, %s99
      %s116 = sphi 0, %s100
      %s122 = sphi 0, %s124
      %s125 = sphi 0, %s122
      %s126 = sphi 0, %s125
      %s142 = sphi 0, %s126
    $region4: #{tpu_custom_call.1} parent=1 // loop_header_branch
      %21 = sbr.rel (%p19) target = $region8
    $region5: #{tpu_custom_call.1} parent=1 // loop_body
      %s23 = ssub.s32 %s18, 1
      %s24 = ssub.s32 %s18, 2
      %s25 = sadd.s32 %s18, 1
      %s26 = ssub.s32 %s18, %s25
      %p27 = scmp.eq.s32.totalorder %s26, 0
      %s29 = sadd.s32 %s28, 1
      %s30 = scalar_select %p27, %s28, %s29
      %p33 = pneg %p27
      %p34 = scmp.eq.s32.totalorder %s18, 1
      %p35 = por %p33, %p34
      %p36 = scmp.ne.s32.totalorder %s28, %s31
      %p37 = scmp.eq.s32.totalorder %s18, 0
      %p38 = por %p36, %p37
      %p39 = scmp.ne.s32.totalorder %s28, %s31
      %p40 = scmp.eq.s32.totalorder %s23, 1
      %p41 = por %p39, %p40
      %p42 = scmp.ne.s32.totalorder %s31, %s32
      %p43 = scmp.eq.s32.totalorder %s23, 0
      %p44 = por %p42, %p43
      %p45 = scmp.ne.s32.totalorder %s31, %s32
      %p46 = scmp.eq.s32.totalorder %s24, 1
      %p47 = por %p45, %p46
      %p49 = scmp.ne.s32.totalorder %s32, %s48
      %p50 = scmp.eq.s32.totalorder %s24, 0
      %p51 = por %p49, %p50
      %s53 = sadd.s32 %s52, 1
      %p56 = scmp.eq.s32.totalorder %s18, 1
      %p57 = scmp.ne.s32.totalorder %s52, %s54
      %p58 = scmp.eq.s32.totalorder %s18, 0
      %p59 = por %p57, %p58
      %p60 = scmp.ne.s32.totalorder %s52, %s54
      %p61 = scmp.eq.s32.totalorder %s23, 1
      %p62 = por %p60, %p61
      %p63 = scmp.ne.s32.totalorder %s54, %s55
      %p64 = scmp.eq.s32.totalorder %s23, 0
      %p65 = por %p63, %p64
      %p66 = scmp.ne.s32.totalorder %s54, %s55
      %p67 = scmp.eq.s32.totalorder %s24, 1
      %p68 = por %p66, %p67
      %p70 = scmp.ne.s32.totalorder %s55, %s69
      %p71 = scmp.eq.s32.totalorder %s24, 0
      %p72 = por %p70, %p71
      %s74 = sadd.s32 %s73, 1
      %p77 = scmp.eq.s32.totalorder %s18, 1
      %p78 = scmp.ne.s32.totalorder %s73, %s75
      %p79 = scmp.eq.s32.totalorder %s18, 0
      %p80 = por %p78, %p79
      %p81 = scmp.ne.s32.totalorder %s73, %s75
      %p82 = scmp.eq.s32.totalorder %s23, 1
      %p83 = por %p81, %p82
      %p84 = scmp.ne.s32.totalorder %s75, %s76
      %p85 = scmp.eq.s32.totalorder %s23, 0
      %p86 = por %p84, %p85
      %p87 = scmp.ne.s32.totalorder %s75, %s76
      %p88 = scmp.eq.s32.totalorder %s24, 1
      %p89 = por %p87, %p88
      %p91 = scmp.ne.s32.totalorder %s76, %s90
      %p92 = scmp.eq.s32.totalorder %s24, 0
      %p93 = por %p91, %p92
      %s94 = ssub.s32 %s18, %s25
      %p95 = scmp.eq.s32.totalorder %s94, 0
      %s97 = sadd.s32 %s96, 1
      %s98 = scalar_select %p95, %s96, %s97
      %p101 = pneg %p95
      %p102 = scmp.eq.s32.totalorder %s18, 1
      %p103 = por %p101, %p102
      %p104 = scmp.ne.s32.totalorder %s96, %s99
      %p105 = scmp.eq.s32.totalorder %s18, 0
      %p106 = por %p104, %p105
      %p107 = scmp.ne.s32.totalorder %s96, %s99
      %p108 = scmp.eq.s32.totalorder %s23, 1
      %p109 = por %p107, %p108
      %p110 = scmp.ne.s32.totalorder %s99, %s100
      %p111 = scmp.eq.s32.totalorder %s23, 0
      %p112 = por %p110, %p111
      %p113 = scmp.ne.s32.totalorder %s99, %s100
      %p114 = scmp.eq.s32.totalorder %s24, 1
      %p115 = por %p113, %p114
      %p117 = scmp.ne.s32.totalorder %s100, %s116
      %p118 = scmp.eq.s32.totalorder %s24, 0
      %p119 = por %p117, %p118
      %s120 = ssub.s32 %s18, %s25
      %p121 = scmp.eq.s32.totalorder %s120, 0
      %s123 = sadd.s32 %s122, 1
      %s124 = scalar_select %p121, %s122, %s123
      %p127 = pneg %p121
      %p128 = scmp.eq.s32.totalorder %s18, 1
      %p129 = por %p127, %p128
      %p130 = scmp.ne.s32.totalorder %s122, %s125
      %p131 = scmp.eq.s32.totalorder %s18, 0
      %p132 = por %p130, %p131
      %p133 = scmp.ne.s32.totalorder %s122, %s125
      %p134 = scmp.eq.s32.totalorder %s23, 1
      %p135 = por %p133, %p134
      %p136 = scmp.ne.s32.totalorder %s125, %s126
      %p137 = scmp.eq.s32.totalorder %s23, 0
      %p138 = por %p136, %p137
      %p139 = scmp.ne.s32.totalorder %s125, %s126
      %p140 = scmp.eq.s32.totalorder %s24, 1
      %p141 = por %p139, %p140
      %p143 = scmp.ne.s32.totalorder %s126, %s142
      %p144 = scmp.eq.s32.totalorder %s24, 0
      %p145 = por %p143, %p144
      %p146 = scmp.le.s32.totalorder 1, %s18
      %p147 = scmp.lt.s32.totalorder %s18, 3
      %p148 = pnand %p146, %p147
      %p149 = pneg %p148
      // Predicated region
      $region9: #{tpu_custom_call.1} parent=5 // pred_check
        _
      $region10: #{tpu_custom_call.1} parent=5 // pred_check_branch
        %151 = sbr.rel (%p148) target = $region12
      $region11: #{tpu_custom_call.1} parent=5 // pred_region
        %s152 = ssub.s32 %s18, 1
        // Predicated region
        $region13: #{tpu_custom_call.1} parent=11 // pred_check
          %p153 = pneg %p65
        $region14: #{tpu_custom_call.1} parent=11 // pred_check_branch
          %155 = sbr.rel (%p153) target = $region16
        $region15: #{tpu_custom_call.1} parent=11 // pred_region
          %s157 = ssub.s32 64, 64
          %158 = vsyncadd [#allocation10], %s157
          %s160 = sshll.u32 [#allocation9], 4
          %s161 = int_to_ptr.vmem [resolvable:$true] %s160
          %163 = dma.hbm_to_vmem [thread:$0]  %s1, 64, %s161, [#allocation10]
        $region16: #{tpu_custom_call.1} parent=11 // pred_fallthru
          _
        // Predicated region
        $region17: #{tpu_custom_call.1} parent=11 // pred_check
          %p164 = pneg %p86
        $region18: #{tpu_custom_call.1} parent=11 // pred_check_branch
          %166 = sbr.rel (%p164) target = $region20
        $region19: #{tpu_custom_call.1} parent=11 // pred_region
          _
        $region20: #{tpu_custom_call.1} parent=11 // pred_fallthru
          _
      $region12: #{tpu_custom_call.1} parent=5 // pred_fallthru
        _
      %p167 = scmp.lt.s32.totalorder %s18, 2
      // Predicated region
      $region21: #{tpu_custom_call.1} parent=5 // pred_check
        %p168 = pneg %p167
      $region22: #{tpu_custom_call.1} parent=5 // pred_check_branch
        %170 = sbr.rel (%p168) target = $region24
      $region23: #{tpu_custom_call.1} parent=5 // pred_region
        // Predicated region
        $region25: #{tpu_custom_call.1} parent=23 // pred_check
          %p171 = pneg %p38
        $region26: #{tpu_custom_call.1} parent=23 // pred_check_branch
          %173 = sbr.rel (%p171) target = $region28
        $region27: #{tpu_custom_call.1} parent=23 // pred_region
          %s174 = sand.u32 %s28, 1
          %s175 = scalar_lea.sflag [#allocation7], %s174
          %s176 = sand.u32 %s28, 1
          %s177 = smul.addr %s176, 8
          %s178 = scalar_lea.vmem [#allocation6], %s177
          %s180 = ssub.s32 128, 128
          %181 = vsyncadd %s175, %s180
          %s182 = smul.addr %s18, 2
          %s183 = smul.addr %s182, 64
          %s184 = scalar_lea.hbm %s0, %s183
          %s186 = sshll.u32 %s178, 4
          %s187 = int_to_ptr.vmem [resolvable:$true] %s186
          %189 = dma.hbm_to_vmem [thread:$0]  %s184, 128, %s187, %s175
        $region28: #{tpu_custom_call.1} parent=23 // pred_fallthru
          _
      $region24: #{tpu_custom_call.1} parent=5 // pred_fallthru
        _
      %p190 = scmp.le.s32.totalorder 1, %s18
      %p191 = scmp.lt.s32.totalorder %s18, 3
      %p192 = pnand %p190, %p191
      %p193 = pneg %p192
      // Predicated region
      $region29: #{tpu_custom_call.1} parent=5 // pred_check
        _
      $region30: #{tpu_custom_call.1} parent=5 // pred_check_branch
        %195 = sbr.rel (%p192) target = $region32
      $region31: #{tpu_custom_call.1} parent=5 // pred_region
        %s196 = ssub.s32 %s18, 1
        %s197 = sand.u32 %s31, 1
        %s198 = scalar_lea.sflag [#allocation7], %s197
        %s199 = sand.u32 %s31, 1
        %s200 = smul.addr %s199, 8
        %s201 = scalar_lea.vmem [#allocation6], %s200
        // Predicated region
        $region33: #{tpu_custom_call.1} parent=31 // pred_check
          %p202 = pneg %p44
        $region34: #{tpu_custom_call.1} parent=31 // pred_check_branch
          %204 = sbr.rel (%p202) target = $region36
        $region35: #{tpu_custom_call.1} parent=31 // pred_region
          %205 = dma.done %s198, 128
        $region36: #{tpu_custom_call.1} parent=31 // pred_fallthru
          _
        // Predicated region
        $region37: #{tpu_custom_call.1} parent=31 // pred_check
          %p206 = pneg %p65
        $region38: #{tpu_custom_call.1} parent=31 // pred_check_branch
          %208 = sbr.rel (%p206) target = $region40
        $region39: #{tpu_custom_call.1} parent=31 // pred_region
          %209 = dma.done [#allocation10], 64
        $region40: #{tpu_custom_call.1} parent=31 // pred_fallthru
          _
        %s210 = sand.u32 %s31, 1
        %s211 = scalar_lea.sflag [#allocation7], %s210
        %s212 = sand.u32 %s31, 1
        %s213 = smul.addr %s212, 8
        %s214 = scalar_lea.vmem [#allocation6], %s213
        %p215 = pneg %p44
        %p216 = pneg %p41
        %p217 = pneg %p65
        %p218 = pneg %p62
        %p219 = pneg %p86
        %p220 = pneg %p83
        %p221 = pneg %p112
        %p222 = pneg %p109
        %s223 = sand.u32 %s99, 1
        %s224 = scalar_lea.sflag [#allocation8], %s223
        %s225 = sand.u32 %s99, 1
        %s226 = smul.addr %s225, 8
        %s227 = scalar_lea.vmem [#allocation11], %s226
        %p228 = pneg %p138
        %p229 = pneg %p135
        %p230 = scmp.lt.s32.totalorder %s23, 1
        %s231 = scalar_select %p230, %s23, 1
        %s232 = smul.addr %s231, 4
        %s233 = scalar_lea.vmem %s4, %s232
        %p234 = scmp.lt.s32.totalorder %s23, 1
        %s235 = scalar_select %p234, %s23, 1
        %s236 = smul.addr %s235, 4
        %s237 = scalar_lea.vmem %s4, %s236
        %238 = vst [vmem:[#allocation2] sm:$0xff] 0.0
        %239 = vst [vmem:[#allocation2 + $0x8] sm:$0xff] 0.0
        %240 = vst [vmem:[#allocation4] sm:$0xff] 0.0
        %241 = vst [vmem:[#allocation5] sm:$0xff] 0.0
        %v242 = vld [vmem:[%s201] sm:$0xff]
        %243 = vst [vmem:[#allocation2 + $0x4] sm:$0xff] %v242
        %v244 = vld [vmem:[#allocation2] sm:$0xff]
        %v245 = vld [vmem:[#allocation2 + $0x8] sm:$0xf]
        %v246 = vld [vmem:[%s2] ss:$2 sm:$0x3]
        %v248 = vlaneseq
        %v249 = vshrl.u32 %v248, 7
        %v250 = vsub.s32 0, %v249
        %v251 = vrot.slane %v246, %v250
        %v252 = vlaneseq
        %v253 = vshrl.u32 %v252, 7
        %v254 = vsub.s32 1, %v253
        %v255 = vrot.slane %v246, %v254
        %v256 = vcombine.low %v251, %v255
        %257 = vrot.lane.b32.xlu0 %v256, 111
        %v258 = vpop.permute.xlu0 %257
        %v259 = vrot.slane %v258, 4
        %vm260 = vcmask 908288
        %v261 = vsel %vm260, %v259, %v258
        %v264 = vmul.f32 %v244, %v261
        %v265 = vmul.f32 %v245, %v259
        %v268 = vcombine.high %v264, %v264
        %269 = vrot.lane.b32.xlu0 %v264, 17
        %v270 = vpop.permute.xlu0 %269
        %271 = vrot.lane.b32.xlu0 %v268, 17
        %v272 = vpop.permute.xlu0 %271
        %273 = vrot.lane.b32.xlu0 %v265, 17
        %v274 = vpop.permute.xlu0 %273
        %vm275 = vcmask 138240
        %v276 = vsel %vm275, %v270, %v272
        %v277 = vsel %vm275, %v272, %v274
        %280 = vst [vmem:[#allocation3] sm:$0xf] %v276
        %281 = vst [vmem:[#allocation3 + $0x8] sm:$0xf] %v277
        %v282 = vld [vmem:[#allocation2] sm:$0xff]
        %v283 = vld [vmem:[#allocation2 + $0x8] sm:$0xf]
        %v286 = vcombine.low %v282, %v282
        %v287 = vcombine.low %v283, %v283
        %288 = vrot.lane.b32.xlu0 %v286, 16
        %v289 = vpop.permute.xlu0 %288
        %290 = vrot.lane.b32.xlu0 %v282, 16
        %v291 = vpop.permute.xlu0 %290
        %292 = vrot.lane.b32.xlu0 %v287, 16
        %v293 = vpop.permute.xlu0 %292
        %vm294 = vcmask 130048
        %v295 = vsel %vm294, %v289, %v291
        %v296 = vsel %vm294, %v291, %v293
        %299 = vst [vmem:[#allocation3] sm:$0xf0] %v295
        %300 = vst [vmem:[#allocation3 + $0x8] sm:$0xf0] %v296
        %v301 = vld [vmem:[#allocation2] sm:$0xff]
        %v302 = vld [vmem:[#allocation2 + $0x8] sm:$0xf]
        %s303 = scalar_lea.vmem %s2, 1
        %v304 = vld [vmem:[%s303] ss:$2 sm:$0x3]
        %v306 = vlaneseq
        %v307 = vshrl.u32 %v306, 7
        %v308 = vsub.s32 0, %v307
        %v309 = vrot.slane %v304, %v308
        %v310 = vlaneseq
        %v311 = vshrl.u32 %v310, 7
        %v312 = vsub.s32 1, %v311
        %v313 = vrot.slane %v304, %v312
        %v314 = vcombine.low %v309, %v313
        %315 = vrot.lane.b32.xlu0 %v314, 113
        %v316 = vpop.permute.xlu0 %315
        %v317 = vrot.slane %v316, 4
        %vm318 = vcmask 924672
        %v319 = vsel %vm318, %v317, %v316
        %v322 = vmul.f32 %v301, %v319
        %v323 = vmul.f32 %v302, %v317
        %v326 = vcombine.high %v322, %v322
        %327 = vrot.lane.b32.xlu0 %v322, 15
        %v328 = vpop.permute.xlu0 %327
        %329 = vrot.lane.b32.xlu0 %v326, 15
        %v330 = vpop.permute.xlu0 %329
        %331 = vrot.lane.b32.xlu0 %v323, 15
        %v332 = vpop.permute.xlu0 %331
        %vm333 = vcmask 121856
        %v334 = vsel %vm333, %v328, %v330
        %v335 = vsel %vm333, %v330, %v332
        %338 = vst [vmem:[#allocation3 + $0x10] sm:$0xf] %v334
        %339 = vst [vmem:[#allocation3 + $0x18] sm:$0xf] %v335
        %v340 = vld [vmem:[#allocation2] sm:$0xff]
        %v341 = vld [vmem:[#allocation2 + $0x8] sm:$0xf]
        %v342 = vld [vmem:[%s2] ss:$2 sm:$0x3]
        %v344 = vlaneseq
        %v345 = vshrl.u32 %v344, 7
        %v346 = vsub.s32 0, %v345
        %v347 = vrot.slane %v342, %v346
        %v348 = vlaneseq
        %v349 = vshrl.u32 %v348, 7
        %v350 = vsub.s32 1, %v349
        %v351 = vrot.slane %v342, %v350
        %v352 = vcombine.low %v347, %v351
        %353 = vrot.lane.b32.xlu0 %v352, 127
        %v354 = vpop.permute.xlu0 %353
        %v355 = vrot.slane %v354, 4
        %vm356 = vcmask 1039360
        %v357 = vsel %vm356, %v355, %v354
        %v360 = vmul.f32 %v340, %v357
        %v361 = vmul.f32 %v341, %v355
        %v364 = vcombine.low %v360, %v360
        %v365 = vcombine.low %v361, %v361
        %366 = vrot.lane.b32.xlu0 %v364, 1
        %v367 = vpop.permute.xlu0 %366
        %368 = vrot.lane.b32.xlu0 %v360, 1
        %v369 = vpop.permute.xlu0 %368
        %370 = vrot.lane.b32.xlu0 %v365, 1
        %v371 = vpop.permute.xlu0 %370
        %vm372 = vcmask 7168
        %v373 = vsel %vm372, %v367, %v369
        %v374 = vsel %vm372, %v369, %v371
        %377 = vst [vmem:[#allocation3 + $0x10] sm:$0xf0] %v373
        %378 = vst [vmem:[#allocation3 + $0x18] sm:$0xf0] %v374
        %v379 = vld [vmem:[#allocation2 + $0x4] sm:$0xff]
        %v381 = vcombine.high %v379, %v379
        %383 = vst [vmem:[#allocation3 + $0x20] sm:$0xf] %v379
        %384 = vst [vmem:[#allocation3 + $0x28] sm:$0xf] %v381
        %v385 = vld [vmem:[#allocation2 + $0x4] sm:$0xff]
        %v386 = vld [vmem:[#allocation2 + $0xc] sm:$0xf]
        %v387 = vld [vmem:[%s303] ss:$2 sm:$0x3]
        %v389 = vlaneseq
        %v390 = vshrl.u32 %v389, 7
        %v391 = vsub.s32 0, %v390
        %v392 = vrot.slane %v387, %v391
        %v393 = vlaneseq
        %v394 = vshrl.u32 %v393, 7
        %v395 = vsub.s32 1, %v394
        %v396 = vrot.slane %v387, %v395
        %v397 = vcombine.low %v392, %v396
        %398 = vrot.lane.b32.xlu0 %v397, 1
        %v399 = vpop.permute.xlu0 %398
        %v400 = vrot.slane %v399, 4
        %v401 = vsel %vm372, %v400, %v399
        %v404 = vmul.f32 %v385, %v401
        %v405 = vmul.f32 %v386, %v400
        %v408 = vcombine.low %v404, %v404
        %v409 = vcombine.low %v405, %v405
        %410 = vrot.lane.b32.xlu0 %v408, 127
        %v411 = vpop.permute.xlu0 %410
        %412 = vrot.lane.b32.xlu0 %v404, 127
        %v413 = vpop.permute.xlu0 %412
        %414 = vrot.lane.b32.xlu0 %v409, 127
        %v415 = vpop.permute.xlu0 %414
        %v416 = vsel %vm356, %v411, %v413
        %v417 = vsel %vm356, %v413, %v415
        %420 = vst [vmem:[#allocation3 + $0x20] sm:$0xf0] %v416
        %421 = vst [vmem:[#allocation3 + $0x28] sm:$0xf0] %v417
        %v422 = vld [vmem:[#allocation2 + $0x4] sm:$0xff]
        %v423 = vld [vmem:[#allocation2 + $0xc] sm:$0xf]
        %v424 = vld [vmem:[%s2] ss:$2 sm:$0x3]
        %v426 = vlaneseq
        %v427 = vshrl.u32 %v426, 7
        %v428 = vsub.s32 0, %v427
        %v429 = vrot.slane %v424, %v428
        %v430 = vlaneseq
        %v431 = vshrl.u32 %v430, 7
        %v432 = vsub.s32 1, %v431
        %v433 = vrot.slane %v424, %v432
        %v434 = vcombine.low %v429, %v433
        %435 = vrot.lane.b32.xlu0 %v434, 15
        %v436 = vpop.permute.xlu0 %435
        %v437 = vrot.slane %v436, 4
        %v438 = vsel %vm333, %v437, %v436
        %v441 = vmul.f32 %v422, %v438
        %v442 = vmul.f32 %v423, %v437
        %v445 = vcombine.high %v441, %v441
        %446 = vrot.lane.b32.xlu0 %v441, 113
        %v447 = vpop.permute.xlu0 %446
        %448 = vrot.lane.b32.xlu0 %v445, 113
        %v449 = vpop.permute.xlu0 %448
        %450 = vrot.lane.b32.xlu0 %v442, 113
        %v451 = vpop.permute.xlu0 %450
        %v452 = vsel %vm318, %v447, %v449
        %v453 = vsel %vm318, %v449, %v451
        %456 = vst [vmem:[#allocation3 + $0x30] sm:$0xf] %v452
        %457 = vst [vmem:[#allocation3 + $0x38] sm:$0xf] %v453
        %v458 = vld [vmem:[#allocation2 + $0x4] sm:$0xff]
        %v459 = vld [vmem:[#allocation2 + $0xc] sm:$0xf]
        %v462 = vcombine.low %v458, %v458
        %v463 = vcombine.low %v459, %v459
        %464 = vrot.lane.b32.xlu0 %v462, 112
        %v465 = vpop.permute.xlu0 %464
        %466 = vrot.lane.b32.xlu0 %v458, 112
        %v467 = vpop.permute.xlu0 %466
        %468 = vrot.lane.b32.xlu0 %v463, 112
        %v469 = vpop.permute.xlu0 %468
        %vm470 = vcmask 916480
        %v471 = vsel %vm470, %v465, %v467
        %v472 = vsel %vm470, %v467, %v469
        %475 = vst [vmem:[#allocation3 + $0x30] sm:$0xf0] %v471
        %476 = vst [vmem:[#allocation3 + $0x38] sm:$0xf0] %v472
        %v477 = vld [vmem:[#allocation2 + $0x4] sm:$0xff]
        %v478 = vld [vmem:[#allocation2 + $0xc] sm:$0xf]
        %v479 = vld [vmem:[%s303] ss:$2 sm:$0x3]
        %v481 = vlaneseq
        %v482 = vshrl.u32 %v481, 7
        %v483 = vsub.s32 0, %v482
        %v484 = vrot.slane %v479, %v483
        %v485 = vlaneseq
        %v486 = vshrl.u32 %v485, 7
        %v487 = vsub.s32 1, %v486
        %v488 = vrot.slane %v479, %v487
        %v489 = vcombine.low %v484, %v488
        %490 = vrot.lane.b32.xlu0 %v489, 17
        %v491 = vpop.permute.xlu0 %490
        %v492 = vrot.slane %v491, 4
        %v493 = vsel %vm275, %v492, %v491
        %v496 = vmul.f32 %v477, %v493
        %v497 = vmul.f32 %v478, %v492
        %v500 = vcombine.high %v496, %v496
        %501 = vrot.lane.b32.xlu0 %v496, 111
        %v502 = vpop.permute.xlu0 %501
        %503 = vrot.lane.b32.xlu0 %v500, 111
        %v504 = vpop.permute.xlu0 %503
        %505 = vrot.lane.b32.xlu0 %v497, 111
        %v506 = vpop.permute.xlu0 %505
        %v507 = vsel %vm260, %v502, %v504
        %v508 = vsel %vm260, %v504, %v506
        %511 = vst [vmem:[#allocation3 + $0x40] sm:$0xf] %v507
        %512 = vst [vmem:[#allocation3 + $0x48] sm:$0xf] %v508
        %v513 = vld [vmem:[#allocation9] sm:$0xf]
        %v514 = vld [vmem:[#allocation3] sm:$0xff]
        %v515 = vld [vmem:[#allocation3 + $0x8] sm:$0xff]
        %v516 = vld [vmem:[#allocation3 + $0x10] sm:$0xff]
        %v517 = vld [vmem:[#allocation3 + $0x18] sm:$0xff]
        %v518 = vld [vmem:[#allocation3 + $0x20] sm:$0xff]
        %v519 = vld [vmem:[#allocation3 + $0x28] sm:$0xff]
        %v520 = vld [vmem:[#allocation3 + $0x30] sm:$0xff]
        %v521 = vld [vmem:[#allocation3 + $0x38] sm:$0xff]
        %v522 = vld [vmem:[#allocation3 + $0x40] sm:$0xf]
        %v523 = vld [vmem:[#allocation3 + $0x48] sm:$0xf]
        %vm524 = vcmask 293888
        %v526 = vsel %vm524, %v513, 0
        %vm528 = vcmask 1043456
        %v530 = vsel %vm528, %v522, 0
        %v533 = vsel %vm528, %v523, 0
        %535 = vmatprep.subr.mxu0 %v515
        %536 = vmatpush1.msra.mxu0 %v514
        %537 = vmatprep.subr.mxu0 %v517
        %538 = vmatpush1.msra.mxu0 %v516
        %539 = vmatprep.subr.mxu0 %v519
        %540 = vmatpush1.msra.mxu0 %v518
        %541 = vmatprep.subr.mxu0 %v521
        %542 = vmatpush1.msra.mxu0 %v520
        %543 = vmatprep.subr.mxu0 %v533
        %544 = vmatpush1.msra.mxu0 %v530
        %545 = vmatprep.subr.mxu0 0.0
        %546 = vmatpush1.msra.mxu0 0.0
        %547 = vmatprep.subr.mxu0 0.0
        %548 = vmatpush1.msra.mxu0 0.0
        %549 = vmatprep.subr.mxu0 0.0
        %550 = vmatpush1.msra.mxu0 0.0
        %551 = vmatprep.subr.mxu0 0.0
        %552 = vmatpush1.msra.mxu0 0.0
        %553 = vmatprep.subr.mxu0 0.0
        %554 = vmatpush1.msra.mxu0 0.0
        %555 = vmatprep.subr.mxu0 0.0
        %556 = vmatpush1.msra.mxu0 0.0
        %557 = vmatprep.subr.mxu0 0.0
        %558 = vmatpush1.msra.mxu0 0.0
        %559 = vmatprep.subr.mxu0 0.0
        %560 = vmatpush1.msra.mxu0 0.0
        %561 = vmatprep.subr.mxu0 0.0
        %562 = vmatpush1.msra.mxu0 0.0
        %563 = vmatprep.subr.mxu0 0.0
        %564 = vmatpush1.msra.mxu0 0.0
        %565 = vmatprep.subr.mxu0 0.0
        %566 = vmatpush1.msra.mxu0 0.0
        %567 = vmatprep.subr.mxu0 0.0
        %568 = vmatpush1.msra.mxu0 0.0
        %569 = vmatprep.subr.mxu0 0.0
        %570 = vmatpush1.msra.mxu0 0.0
        %571 = vmatprep.subr.mxu0 0.0
        %572 = vmatpush1.msra.mxu0 0.0
        %573 = vmatprep.subr.mxu0 0.0
        %574 = vmatpush1.msra.mxu0 0.0
        %575 = vmatprep.subr.mxu0 0.0
        %576 = vmatpush1.msra.mxu0 0.0
        %577 = vmatprep.subr.mxu0 0.0
        %578 = vmatpush1.msra.mxu0 0.0
        %579 = vmatprep.subr.mxu0 0.0
        %580 = vmatpush1.msra.mxu0 0.0
        %581 = vmatprep.subr.mxu0 0.0
        %582 = vmatpush1.msra.mxu0 0.0
        %583 = vmatprep.subr.mxu0 0.0
        %584 = vmatpush1.msra.mxu0 0.0
        %585 = vmatprep.subr.mxu0 0.0
        %586 = vmatpush1.msra.mxu0 0.0
        %587 = vmatprep.subr.mxu0 0.0
        %588 = vmatpush1.msra.mxu0 0.0
        %589 = vmatprep.subr.mxu0 0.0
        %590 = vmatpush1.msra.mxu0 0.0
        %591 = vmatprep.subr.mxu0 0.0
        %592 = vmatpush1.msra.mxu0 0.0
        %593 = vmatprep.subr.mxu0 0.0
        %594 = vmatpush1.msra.mxu0 0.0
        %595 = vmatprep.subr.mxu0 0.0
        %596 = vmatpush1.msra.mxu0 0.0
        %597 = vmatprep.subr.mxu0 0.0
        %598 = vmatpush1.msra.mxu0 0.0
        %599 = vmatprep.mubr.f32.mxu0 0.0
        %600 = vmatmul.mubr.f32.gmra.mrb[0].mxu0 %v526
        %v601 = vpop.f32.mrb[0].mxu0
        %v602 = vadd.f32 0.0, %v601
        %v603 = vpop.f32.mrb[0].mxu0
        %v604 = vadd.f32 0.0, %v603
        %605 = vdwg.mxu0
        %v608 = vcombine.low %v602, %v604
        %610 = vst [vmem:[%s227] sm:$0xff] %v608
        %v611 = vld [vmem:[#allocation4] sm:$0xff]
        %v612 = vadd.f32 %v611, %v608
        %613 = vst [vmem:[#allocation4] sm:$0xff] %v612
        %v614 = vld [vmem:[#allocation5] sm:$0xff]
        %v615 = vmul.f32 %v602, %v602
        %v616 = vmul.f32 %v604, %v604
        %v619 = vcombine.low %v615, %v616
        %v621 = vadd.f32 %v614, %v619
        %622 = vst [vmem:[#allocation5] sm:$0xff] %v621
        %v623 = vld [vmem:[#allocation4] sm:$0xff]
        %v625 = vcombine.high %v623, %v623
        %v627 = vsel %vm528, %v623, 0.0
        %v628 = vsel %vm528, %v625, 0.0
        %v629 = vadd.f32 %v627, %v628
        %630 = vadd.xlane.f32.xlu0 %v629
        %v631 = vpop.xlane.xlu0 %630
        %v632 = vld [vmem:[#allocation5] sm:$0xff]
        %v634 = vcombine.high %v632, %v632
        %v636 = vsel %vm528, %v632, 0.0
        %v637 = vsel %vm528, %v634, 0.0
        %v638 = vadd.f32 %v636, %v637
        %639 = vadd.xlane.f32.xlu0 %v638
        %v640 = vpop.xlane.xlu0 %639
        %v641 = vsel %vm372, %v631, %v640
        %vm642 = vcmask 11264
        %643 = vst.msk [vmem:[%s237] sm:$0xf] %vm642, %v641
        %s644 = sand.u32 %s99, 1
        %s645 = scalar_lea.sflag [#allocation8], %s644
        %s646 = sand.u32 %s99, 1
        %s647 = smul.addr %s646, 8
        %s648 = scalar_lea.vmem [#allocation11], %s647
        %p649 = scmp.lt.s32.totalorder %s23, 1
        %s650 = scalar_select %p649, %s23, 1
        %s651 = smul.addr %s650, 4
        %s652 = scalar_lea.vmem %s4, %s651
        // Predicated region
        $region41: #{tpu_custom_call.1} parent=31 // pred_check
          %p653 = pneg %p109
        $region42: #{tpu_custom_call.1} parent=31 // pred_check_branch
          %655 = sbr.rel (%p653) target = $region44
        $region43: #{tpu_custom_call.1} parent=31 // pred_region
          %s657 = ssub.s32 128, 128
          %658 = vsyncadd %s645, %s657
          %s659 = smul.addr %s23, 2
          %s660 = smul.addr %s659, 64
          %s661 = scalar_lea.hbm %s3, %s660
          %s663 = sshll.u32 %s648, 4
          %s664 = int_to_ptr.vmem [resolvable:$true] %s663
          %666 = dma.vmem_to_hbm [thread:$0]  %s664, 128, %s661, %s645
        $region44: #{tpu_custom_call.1} parent=31 // pred_fallthru
          _
        // Predicated region
        $region45: #{tpu_custom_call.1} parent=31 // pred_check
          %p667 = pneg %p135
        $region46: #{tpu_custom_call.1} parent=31 // pred_check_branch
          %669 = sbr.rel (%p667) target = $region48
        $region47: #{tpu_custom_call.1} parent=31 // pred_region
          _
        $region48: #{tpu_custom_call.1} parent=31 // pred_fallthru
          _
      $region32: #{tpu_custom_call.1} parent=5 // pred_fallthru
        _
      %p670 = scmp.le.s32.totalorder 2, %s18
      // Predicated region
      $region49: #{tpu_custom_call.1} parent=5 // pred_check
        %p671 = pneg %p670
      $region50: #{tpu_custom_call.1} parent=5 // pred_check_branch
        %673 = sbr.rel (%p671) target = $region52
      $region51: #{tpu_custom_call.1} parent=5 // pred_region
        %s674 = ssub.s32 %s18, 2
        // Predicated region
        $region53: #{tpu_custom_call.1} parent=51 // pred_check
          %p675 = pneg %p115
        $region54: #{tpu_custom_call.1} parent=51 // pred_check_branch
          %677 = sbr.rel (%p675) target = $region56
        $region55: #{tpu_custom_call.1} parent=51 // pred_region
          %s678 = sand.u32 %s100, 1
          %s679 = scalar_lea.sflag [#allocation8], %s678
          %s680 = sand.u32 %s100, 1
          %s681 = smul.addr %s680, 8
          %s682 = scalar_lea.vmem [#allocation11], %s681
          %683 = dma.done %s679, 128
        $region56: #{tpu_custom_call.1} parent=51 // pred_fallthru
          _
        // Predicated region
        $region57: #{tpu_custom_call.1} parent=51 // pred_check
          %p684 = pneg %p141
        $region58: #{tpu_custom_call.1} parent=51 // pred_check_branch
          %686 = sbr.rel (%p684) target = $region60
        $region59: #{tpu_custom_call.1} parent=51 // pred_region
          %p687 = scmp.lt.s32.totalorder %s24, 1
          %s688 = scalar_select %p687, %s24, 1
          %s689 = smul.addr %s688, 4
          %s690 = scalar_lea.vmem %s4, %s689
        $region60: #{tpu_custom_call.1} parent=51 // pred_fallthru
          _
      $region52: #{tpu_custom_call.1} parent=5 // pred_fallthru
        _
    $region6: #{tpu_custom_call.1} parent=1 // loop_footer
      %s22 = sadd.s32 1, %s18
    $region7: #{tpu_custom_call.1} parent=1 // loop_footer_branch
      %17 = sbr.rel target = $region3
    $region8: #{tpu_custom_call.1} parent=1 // loop_exit
      _
    %691 = vsyncpa [#allocation7], 1
    %s692 = scalar_lea.sflag [#allocation7], 1
    %693 = vsyncpa %s692, 1
    %694 = vsyncpa [#allocation10], 1
    %695 = vsyncpa [#allocation8], 1
    %s696 = scalar_lea.sflag [#allocation8], 1
    %697 = vsyncpa %s696, 1

</llo_original>
